<compile_context>
chip_gen: v5e
topology: v5e:2x2
jax: 0.10.0
libtpu: 0.0.40
codegen_flags: <defaults>
</compile_context>

<pallas_src>
import jax
import jax.numpy as jnp
from jax.experimental import pallas as pl
from jax.experimental.pallas import tpu as pltpu


def _modulate_kernel(mod_ref, base_ref, out_ref):
    # mod_ref:  VMEM [TILE_T, 1]        f32  (modulation column for this tile)
    # base_ref: VMEM [1, TILE_LD]       f32  (base-latent row slice)
    # out_ref:  VMEM [TILE_T, TILE_LD]  out dtype
    # Single VPU broadcast multiply; one explicit cast on the store.
    out_ref[...] = (mod_ref[...] * base_ref[...]).astype(out_ref.dtype)


def _round_up(x: int, m: int) -> int:
    return ((x + m - 1) // m) * m


def _sublane_multiple(dtype) -> int:
    # Native sublane packing of the store dtype: 8 for 32-bit, 16 for 16-bit,
    # 32 for 8-bit.
    bits = jnp.dtype(dtype).itemsize * 8
    return max(8, 256 // bits)


def _tile_byte_target() -> int:
    # Per-chip output-tile byte target, chosen so that
    #   2 x out_tile + 2 x base_slice + (possible f32 broadcast temp)
    # stays under the default scoped-VMEM limit of each generation.
    try:
        kind = jax.devices()[0].device_kind.lower()
    except Exception:
        return 4 << 20
    if "v5e" in kind or "v5 lite" in kind or "v5lite" in kind:
        return 3 << 20   # v5e scoped-VMEM default is only 16 MiB
    if "v6" in kind:
        return 8 << 20   # comfortably under the 32 MiB default (128 MiB physical)
    if "v7" in kind or "7x" in kind:
        return 8 << 20   # under the 32 MiB default; physical VMEM is only 64 MiB
    return 4 << 20


def build_modulated_latents(
    modulation: jax.Array,
    base_latents: jax.Array,
    *,
    tile_t: int | None = None,
    tile_ld: int | None = None,
    tile_bytes: int | None = None,
    use_pallas: bool | None = None,
) -> jax.Array:
    """Compute modulation[:, None, None] * base_latents[[0]]  ->  [T, L, D]."""
    T = int(modulation.shape[0])
    _, L, D = base_latents.shape
    LD = L * D
    out_dtype = jnp.result_type(modulation.dtype, base_latents.dtype)
    itemsize = jnp.dtype(out_dtype).itemsize

    # Tiny buffers: one fused XLA broadcast multiply beats any pallas_call
    # launch/pipeline fixed cost. Keep Pallas for large T*L*D.
    if use_pallas is None:
        use_pallas = T * LD * itemsize >= (1 << 20)  # >= 1 MiB
    if not use_pallas:
        return (modulation[:, None, None] * base_latents[0:1]).astype(out_dtype)

    # Lane-dense layouts: pad L*D up to a multiple of 128 so the store stream
    # is unmasked vst (padding sliced off after the call).
    LD_pad = _round_up(LD, 128)
    base_flat = base_latents[0:1].reshape(1, LD).astype(jnp.float32)
    if LD_pad != LD:
        base_flat = jnp.pad(base_flat, ((0, 0), (0, LD_pad - LD)))
    mod_col = modulation.reshape(T, 1).astype(jnp.float32)

    # ---- tile sizing (conservative f32 footprint -> scoped-VMEM defaults hold)
    target = int(tile_bytes) if tile_bytes is not None else _tile_byte_target()
    elem = max(itemsize, 4)              # f32 math footprint per element
    sub = _sublane_multiple(out_dtype)   # dtype-native sublane multiple

    if tile_ld is None:
        if LD_pad * elem * sub > target:
            # Wide latents: tile the LD axis so even a minimal-height block fits.
            tile_ld = max(128, (target // (elem * sub)) // 128 * 128)
            tile_ld = min(tile_ld, LD_pad)
        else:
            tile_ld = LD_pad
    else:
        tile_ld = int(tile_ld)
        tile_ld = LD_pad if tile_ld >= LD_pad else max(128, tile_ld // 128 * 128)
    grid_ld = pl.cdiv(LD_pad, tile_ld)

    if tile_t is None:
        rows = max(sub, (target // (tile_ld * elem)) // sub * sub)
        # Keep >= ~4 total grid steps so both v7x TensorCores get work and the
        # pipeline has steps to overlap (megacore via "parallel" semantics).
        min_steps = 4
        if grid_ld < min_steps and T > sub:
            steps_t = pl.cdiv(min_steps, grid_ld)
            rows = min(rows, max(sub, _round_up(pl.cdiv(T, steps_t), sub)))
        tile_t = min(rows, T)
    else:
        tile_t = max(1, min(int(tile_t), T))
        if tile_t < T:
            tile_t = max(8, tile_t // 8 * 8)  # partial-T blocks must be 8-aligned
    if tile_t >= T:
        tile_t = T  # full-extent block: legal even when T % sub != 0
    grid_t = pl.cdiv(T, tile_t)

    out_flat = pl.pallas_call(
        _modulate_kernel,
        out_shape=jax.ShapeDtypeStruct((T, LD_pad), out_dtype),
        grid=(grid_t, grid_ld),
        in_specs=[
            pl.BlockSpec((tile_t, 1), lambda i, j: (i, 0)),   # modulation column
            # TODO(synk): mark the base slice single-buffered via
            # pipeline_mode=pl.Buffered(1) once verified on this JAX version;
            # saves one small (1, tile_ld) f32 VMEM copy.
            pl.BlockSpec((1, tile_ld), lambda i, j: (0, j)),  # base row slice
        ],
        out_specs=pl.BlockSpec((tile_t, tile_ld), lambda i, j: (i, j)),
        compiler_params=pltpu.CompilerParams(
            # Independent (T, LD) tiles: megacore-shardable on v7x.
            dimension_semantics=("parallel", "parallel"),
        ),
    )(mod_col, base_flat)

    if LD_pad != LD:
        out_flat = out_flat[:, :LD]
    return out_flat.reshape(T, L, D)


class ModulatedLatents:
    """JAX/Pallas port of maua ModulatedLatents.

    The modulated-latent buffer is built once (Pallas kernel for large buffers,
    fused XLA broadcast for tiny ones); forward() slices out the current frame
    and advances the index, mirroring the PyTorch module.
    """

    def __init__(self, modulation, base_latents, *, use_pallas=None,
                 tile_t=None, tile_ld=None, tile_bytes=None):
        self.latents = build_modulated_latents(
            modulation, base_latents, use_pallas=use_pallas,
            tile_t=tile_t, tile_ld=tile_ld, tile_bytes=tile_bytes,
        )
        self.index = 0

    def forward(self) -> jax.Array:
        # TODO(synk): if called per-frame in a hot loop, switch to a jitted
        # lax.dynamic_slice to avoid per-call Python dispatch of a tiny slice.
        lat = self.latents[self.index : self.index + 1]  # [1, L, D]
        self.index += 1
        return lat

    __call__ = forward


if __name__ == "__main__":
    key = jax.random.PRNGKey(0)
    (k_mod, k_base, k_mod2, k_base2,
     k_mod3, k_base3, k_mod4, k_base4) = jax.random.split(key, 8)

    # --- Test 1: module semantics at small shapes (force the Pallas path). ---
    T, N, L, D = 8, 2, 8, 128
    modulation = jax.random.uniform(k_mod, (T,), dtype=jnp.float32)
    base_latents = jax.random.normal(k_base, (N, L, D), dtype=jnp.float32)

    module = ModulatedLatents(modulation, base_latents, use_pallas=True)
    jax.block_until_ready(module.latents)
    out0 = module.forward()
    out1 = module.forward()
    jax.block_until_ready(out0)
    jax.block_until_ready(out1)

    ref = modulation[:, None, None] * base_latents[0:1]
    assert module.latents.shape == (T, L, D)
    assert out0.shape == (1, L, D) and out1.shape == (1, L, D)
    assert jnp.allclose(module.latents, ref, atol=1e-6, rtol=1e-6)
    assert jnp.allclose(out0, ref[0:1], atol=1e-6, rtol=1e-6)
    assert jnp.allclose(out1, ref[1:2], atol=1e-6, rtol=1e-6)
    assert module.index == 2

    # --- Test 2: partial last T tile (T not a multiple of the tile rows). ---
    T2 = 13
    mod2 = jax.random.uniform(k_mod2, (T2,), dtype=jnp.float32)
    base2 = jax.random.normal(k_base2, (N, L, D), dtype=jnp.float32)
    got2 = build_modulated_latents(mod2, base2, use_pallas=True, tile_t=8)
    ref2 = mod2[:, None, None] * base2[0:1]
    assert jnp.allclose(got2, ref2, atol=1e-6, rtol=1e-6)

    # --- Test 3: non-128-multiple L*D exercises the lane-padding path. ---
    T3, L3, D3 = 12, 3, 40            # L*D = 120 -> padded to 128 internally
    mod3 = jax.random.uniform(k_mod3, (T3,), dtype=jnp.float32)
    base3 = jax.random.normal(k_base3, (N, L3, D3), dtype=jnp.float32)
    got3 = build_modulated_latents(mod3, base3, use_pallas=True)
    ref3 = mod3[:, None, None] * base3[0:1]
    assert got3.shape == (T3, L3, D3)
    assert jnp.allclose(got3, ref3, atol=1e-6, rtol=1e-6)

    # --- Test 4: 2-D (T, LD) tiling path with a forced tile_ld split. ---
    T4, L4, D4 = 16, 8, 256           # LD = 2048, split into two 1024-lane tiles
    mod4 = jax.random.uniform(k_mod4, (T4,), dtype=jnp.float32)
    base4 = jax.random.normal(k_base4, (N, L4, D4), dtype=jnp.float32)
    got4 = build_modulated_latents(mod4, base4, use_pallas=True,
                                   tile_t=8, tile_ld=1024)
    ref4 = mod4[:, None, None] * base4[0:1]
    assert jnp.allclose(got4, ref4, atol=1e-6, rtol=1e-6)

    # --- Test 5: tiny-problem gate falls back to the fused XLA path. ---
    gated = build_modulated_latents(modulation, base_latents)
    assert jnp.allclose(gated, ref, atol=1e-6, rtol=1e-6)

    print("KERNEL_OK")
</pallas_src>

<mosaic_0001>
module attributes {stable_mosaic.version = 11 : i64} {
  func.func @_modulate_kernel(%arg0: i32, %arg1: i32, %arg2: memref<8x1xf32, #tpu.memory_space<vmem>>, %arg3: memref<1x1024xf32, #tpu.memory_space<vmem>>, %arg4: memref<8x1024xf32, #tpu.memory_space<vmem>>) attributes {dimension_semantics = [#tpu.dimension_semantics<parallel>, #tpu.dimension_semantics<parallel>], iteration_bounds = array<i64: 1, 1>, scalar_prefetch = 0 : i64, scratch_operands = 0 : i64, tpu.core_type = #tpu.core_type<tc>, window_params = [{transform_indices = @transform_0, window_bounds = array<i64: 8, 1>}, {transform_indices = @transform_1, window_bounds = array<i64: 1, 1024>}, {transform_indices = @transform_2, window_bounds = array<i64: 8, 1024>}]} {
    %c0 = arith.constant 0 : index
    %c0_0 = arith.constant 0 : index
    %0 = vector.load %arg2[%c0, %c0_0] : memref<8x1xf32, #tpu.memory_space<vmem>>, vector<8x1xf32>
    %c0_1 = arith.constant 0 : index
    %c0_2 = arith.constant 0 : index
    %1 = vector.load %arg3[%c0_1, %c0_2] : memref<1x1024xf32, #tpu.memory_space<vmem>>, vector<1x1024xf32>
    %2 = vector.broadcast %0 : vector<8x1xf32> to vector<8x1024xf32>
    %3 = vector.broadcast %1 : vector<1x1024xf32> to vector<8x1024xf32>
    %4 = arith.mulf %2, %3 : vector<8x1024xf32>
    %c0_3 = arith.constant 0 : index
    %c0_4 = arith.constant 0 : index
    %5 = vector.load %arg4[%c0_3, %c0_4] : memref<8x1024xf32, #tpu.memory_space<vmem>>, vector<8x1024xf32>
    tpu.vector_store %arg4[%c0_3, %c0_4], %4 {strides = array<i32>} : memref<8x1024xf32, #tpu.memory_space<vmem>>, vector<8x1024xf32>,
    return
  }
  func.func @transform_0(%arg0: i32, %arg1: i32) -> (i32, i32) {
    %c0_i32 = arith.constant 0 : i32
    %c0_i32_0 = arith.constant 0 : i32
    return %arg0, %c0_i32 : i32, i32
  }
  func.func @transform_1(%arg0: i32, %arg1: i32) -> (i32, i32) {
    %c0_i32 = arith.constant 0 : i32
    %c0_i32_0 = arith.constant 0 : i32
    return %c0_i32, %arg1 : i32, i32
  }
  func.func @transform_2(%arg0: i32, %arg1: i32) -> (i32, i32) {
    %c0_i32 = arith.constant 0 : i32
    return %arg0, %arg1 : i32, i32
  }
}

</mosaic_0001>

<llo_original>
// kernel: tpu_custom_call.1
$region0: #{tpu_custom_call.1}
  #allocation0 [shape = 'u32[]', space=smem, size = 0x4, offset = 0x4, fixed_abs, tag = 'smem constant byte address 0x4 - core index']
  #allocation1 [shape = 'u32[72,128]{1,0:T(1,128)}', space=vmem, size = 0x9000, scoped, tag = 'internal scratch']
  %s0 = inlined_call_operand.vmem [shape: f32[8,1], index: 0, kind: input, shape index: {}]
  %s1 = inlined_call_operand.vmem [shape: f32[1,1024], index: 1, kind: input, shape index: {}]
  %s2 = inlined_call_operand.hbm [shape: f32[8,1024], index: 2, kind: output, shape index: {}]
  %s3 = sld [smem:[#allocation0]]
  $region18: #{tpu_custom_call.1} parent=0
    _
  %s5 = ssub.s32 1, %s3
  %s6 = scalar_select 0, %s5, %s3
  $region1: #{tpu_custom_call.1} parent=0
    #allocation2 [shape = 'u8[32768]{0}', space=vmem, size = 0x8000, scoped, tag = 'output window, operand 0, single buffered']
    #allocation3 [shape = 's32[1]{0}', space=sflag, size = 0x4, scoped, tag = 'scoped memory for tpu_custom_call.1']
    %7 = vsyncpa [#allocation3], 0
    // Predicated region
    $region2: #{tpu_custom_call.1} parent=1 // pred_check
      _
    $region3: #{tpu_custom_call.1} parent=1 // pred_check_branch
      %9 = sbr.rel (0) target = $region5
    $region4: #{tpu_custom_call.1} parent=1 // pred_region
      _
    $region5: #{tpu_custom_call.1} parent=1 // pred_fallthru
      _
    // Predicated region
    $region6: #{tpu_custom_call.1} parent=1 // pred_check
      _
    $region7: #{tpu_custom_call.1} parent=1 // pred_check_branch
      %11 = sbr.rel (0) target = $region9
    $region8: #{tpu_custom_call.1} parent=1 // pred_region
      _
    $region9: #{tpu_custom_call.1} parent=1 // pred_fallthru
      _
    %v12 = vld [vmem:[%s0] sm:$0xff]
    %v13 = vld [vmem:[%s1] sm:$0xff]
    %15 = vset.pattern.permute.xlu0 0
    %16 = vperm.xlu0 %15, %v12
    %v17 = vpop.permute.xlu0 %16
    %v20 = vperm.slane %v13, 0
    %v21 = vperm.slane %v13, 1
    %v22 = vperm.slane %v13, 2
    %v23 = vperm.slane %v13, 3
    %v24 = vperm.slane %v13, 4
    %v25 = vperm.slane %v13, 5
    %v26 = vperm.slane %v13, 6
    %v27 = vperm.slane %v13, 7
    %v36 = vmul.f32 %v17, %v20
    %v37 = vmul.f32 %v17, %v21
    %v38 = vmul.f32 %v17, %v22
    %v39 = vmul.f32 %v17, %v23
    %v40 = vmul.f32 %v17, %v24
    %v41 = vmul.f32 %v17, %v25
    %v42 = vmul.f32 %v17, %v26
    %v43 = vmul.f32 %v17, %v27
    %44 = vst [vmem:[#allocation2] sm:$0xff] %v36
    %45 = vst [vmem:[#allocation2 + $0x8] sm:$0xff] %v37
    %46 = vst [vmem:[#allocation2 + $0x10] sm:$0xff] %v38
    %47 = vst [vmem:[#allocation2 + $0x18] sm:$0xff] %v39
    %48 = vst [vmem:[#allocation2 + $0x20] sm:$0xff] %v40
    %49 = vst [vmem:[#allocation2 + $0x28] sm:$0xff] %v41
    %50 = vst [vmem:[#allocation2 + $0x30] sm:$0xff] %v42
    %51 = vst [vmem:[#allocation2 + $0x38] sm:$0xff] %v43
    // Predicated region
    $region10: #{tpu_custom_call.1} parent=1 // pred_check
      _
    $region11: #{tpu_custom_call.1} parent=1 // pred_check_branch
      %53 = sbr.rel (0) target = $region13
    $region12: #{tpu_custom_call.1} parent=1 // pred_region
      %55 = vsyncadd [#allocation3], 0
      %s57 = sshll.u32 [#allocation2], 4
      %s58 = int_to_ptr.vmem [resolvable:$true] %s57
      %s59 = sshll.u32 %s2, 4
      %s60 = int_to_ptr.hbm [resolvable:$true] %s59
      %62 = dma.vmem_to_hbm [thread:$0]  %s58, 1024, %s60, [#allocation3]
    $region13: #{tpu_custom_call.1} parent=1 // pred_fallthru
      _
    // Predicated region
    $region14: #{tpu_custom_call.1} parent=1 // pred_check
      _
    $region15: #{tpu_custom_call.1} parent=1 // pred_check_branch
      %64 = sbr.rel (0) target = $region17
    $region16: #{tpu_custom_call.1} parent=1 // pred_region
      %66 = dma.done [#allocation3], 1024
    $region17: #{tpu_custom_call.1} parent=1 // pred_fallthru
      _
    %67 = vsyncpa [#allocation3], 1

</llo_original>
